<compile_context>
chip_gen: v7x
topology: tpu7x:2x2x1
jax: 0.10.0
libtpu: 0.0.40
codegen_flags: <defaults>
</compile_context>

<pallas_src>
import functools

import jax
import jax.numpy as jnp
from jax import lax
from jax.experimental import pallas as pl
from jax.experimental.pallas import tpu as pltpu

EPS = 1e-5
_TARGET_BLOCK_ELEMS = 1024 * 1024        # ~4 MiB of f32 per streamed block
_VMEM_LIMIT_BYTES = 32 * 1024 * 1024     # 3x in + 2x out blocks ~ 15-20 MiB


def _ceil_div(a, b):
    return -(-a // b)


def _round_up(a, b):
    return _ceil_div(a, b) * b


def _streamed_spec(block_shape, index_map, depth=3):
    """Streamed-input BlockSpec with triple buffering when supported."""
    if hasattr(pl, "Buffered"):
        try:
            return pl.BlockSpec(block_shape, index_map,
                                pipeline_mode=pl.Buffered(depth))
        except TypeError:  # older BlockSpec signature without pipeline_mode
            pass
    return pl.BlockSpec(block_shape, index_map)


def _compiler_params(n_grid_axes):
    return pltpu.CompilerParams(
        dimension_semantics=("parallel",) * n_grid_axes,
        vmem_limit_bytes=_VMEM_LIMIT_BYTES,
    )


def _pick_lanes(nhw):
    for lanes in (1024, 512, 256, 128):
        if nhw >= 8 * lanes:
            return lanes
    return 128


# --------------------------- kernels: C == 1 path ---------------------------


def _fused_kernel(inv_count, x_ref, g_ref, b_ref, o_ref):
    """Whole zero-padded slab resident in VMEM: stats + normalize, one pass."""
    x = x_ref[...].astype(jnp.float32)
    s = jnp.sum(x, axis=(0, 1), keepdims=True)        # pad zeros are neutral
    sq = jnp.sum(x * x, axis=(0, 1), keepdims=True)
    mean = s * inv_count
    var = jnp.maximum(sq * inv_count - mean * mean, 0.0)
    inv_std = lax.rsqrt(var + EPS)
    scale = g_ref[0] * inv_std
    shift = b_ref[0] - mean * scale
    o_ref[...] = (x * scale + shift).astype(o_ref.dtype)


def _stats_kernel(x_ref, psum_ref, psq_ref):
    """(tile_r, L) block -> (1, 1, L) partial sum / sum-of-squares."""
    x = x_ref[...].astype(jnp.float32)
    psum_ref[...] = jnp.sum(x, axis=0, keepdims=True)[None]
    psq_ref[...] = jnp.sum(x * x, axis=0, keepdims=True)[None]


def _norm_kernel(x_ref, scale_ref, shift_ref, o_ref):
    """y = x * scale + shift with the affine folded into two SMEM scalars."""
    x = x_ref[...].astype(jnp.float32)
    o_ref[...] = (x * scale_ref[0] + shift_ref[0]).astype(o_ref.dtype)


def _bn_single_channel(x, gamma, beta):
    N, C, H, W = x.shape  # C == 1
    nhw = N * H * W
    inv_count = 1.0 / float(nhw)

    # Lane-dense slab: flatten the channel, pad to a (T*tile_r, L) rectangle
    # with L a multiple of 128 and tile_r a multiple of 8 sublanes.
    L = _pick_lanes(nhw)
    rows_raw = _ceil_div(nhw, L)
    tile_r_target = max(8, (_TARGET_BLOCK_ELEMS // L) // 8 * 8)
    T = _ceil_div(rows_raw, tile_r_target)
    tile_r = _round_up(_ceil_div(rows_raw, T), 8)
    R = T * tile_r
    pad = R * L - nhw

    flat = x.reshape(nhw)
    if pad:
        flat = jnp.pad(flat, (0, pad))
    slab = flat.reshape(R, L)

    g32 = gamma.astype(jnp.float32).reshape(1)
    b32 = beta.astype(jnp.float32).reshape(1)

    if T == 1:
        # Small/medium input: single launch, x fully resident in VMEM.
        y_slab = pl.pallas_call(
            functools.partial(_fused_kernel, inv_count),
            out_shape=jax.ShapeDtypeStruct((R, L), x.dtype),
            in_specs=[
                pl.BlockSpec(memory_space=pltpu.MemorySpace.VMEM),
                pl.BlockSpec(memory_space=pltpu.MemorySpace.SMEM),
                pl.BlockSpec(memory_space=pltpu.MemorySpace.SMEM),
            ],
            out_specs=pl.BlockSpec(memory_space=pltpu.MemorySpace.VMEM),
            compiler_params=pltpu.CompilerParams(
                vmem_limit_bytes=_VMEM_LIMIT_BYTES),
        )(slab, g32, b32)
    else:
        # ---- Pass 1: per-tile partial sums (one traversal of x).
        psum, psq = pl.pallas_call(
            _stats_kernel,
            out_shape=(jax.ShapeDtypeStruct((T, 1, L), jnp.float32),
                       jax.ShapeDtypeStruct((T, 1, L), jnp.float32)),
            grid_spec=pl.GridSpec(
                grid=(T,),
                in_specs=[_streamed_spec((tile_r, L), lambda t: (t, 0))],
                out_specs=(pl.BlockSpec((1, 1, L), lambda t: (t, 0, 0)),
                           pl.BlockSpec((1, 1, L), lambda t: (t, 0, 0))),
            ),
            compiler_params=_compiler_params(1),
        )(slab)

        # ---- Tiny cross-tile combine + folded affine constants (XLA).
        count = jnp.float32(nhw)
        mean = jnp.sum(psum) / count
        var = jnp.maximum(jnp.sum(psq) / count - mean * mean, 0.0)
        inv_std = lax.rsqrt(var + EPS)
        scale = g32[0] * inv_std
        shift = b32[0] - mean * scale

        # ---- Pass 2: y = x * scale + shift (in place over the padded slab).
        y_slab = pl.pallas_call(
            _norm_kernel,
            out_shape=jax.ShapeDtypeStruct((R, L), x.dtype),
            grid_spec=pl.GridSpec(
                grid=(T,),
                in_specs=[
                    _streamed_spec((tile_r, L), lambda t: (t, 0)),
                    pl.BlockSpec(memory_space=pltpu.MemorySpace.SMEM),
                    pl.BlockSpec(memory_space=pltpu.MemorySpace.SMEM),
                ],
                out_specs=pl.BlockSpec((tile_r, L), lambda t: (t, 0)),
            ),
            compiler_params=_compiler_params(1),
            input_output_aliases={0: 0} if pad else {},
        )(slab, scale.reshape(1), shift.reshape(1))

    return y_slab.reshape(-1)[:nhw].reshape(N, C, H, W)


# ---------------------- kernels: general C > 1 fallback ---------------------
# Beyond the BatchNorm2d(1) spec; kept transpose-free over the natural layout.


def _fused_nc_kernel(inv_count, x_ref, g_ref, b_ref, o_ref):
    x = x_ref[...].astype(jnp.float32)                 # (Np, C, HWp)
    s = jnp.sum(x, axis=(0, 2), keepdims=True)         # (1, C, 1)
    sq = jnp.sum(x * x, axis=(0, 2), keepdims=True)
    mean = s * inv_count
    var = jnp.maximum(sq * inv_count - mean * mean, 0.0)
    inv_std = lax.rsqrt(var + EPS)
    scale = g_ref[...] * inv_std
    shift = b_ref[...] - mean * scale
    o_ref[...] = (x * scale + shift).astype(o_ref.dtype)


def _stats_nc_kernel(x_ref, psum_ref, psq_ref):
    x = x_ref[...].astype(jnp.float32)                 # (tile_n, C, HWp)
    psum_ref[...] = jnp.sum(x, axis=0, keepdims=True)
    psq_ref[...] = jnp.sum(x * x, axis=0, keepdims=True)


def _norm_nc_kernel(x_ref, scale_ref, shift_ref, o_ref):
    x = x_ref[...].astype(jnp.float32)
    o_ref[...] = (x * scale_ref[...] + shift_ref[...]).astype(o_ref.dtype)


def _bn_multi_channel(x, gamma, beta):
    N, C, H, W = x.shape
    hw = H * W
    hwp = _round_up(hw, 128)
    count = float(N * hw)

    x3 = x.reshape(N, C, hw)
    padded = hwp != hw
    if padded:
        x3 = jnp.pad(x3, ((0, 0), (0, 0), (0, hwp - hw)))

    # TODO(synk): if C*H*W alone exceeds ~VMEM budget this path would need an
    # additional HW tiling level; not needed for BatchNorm2d(1)-scale inputs.
    tile_n = max(1, min(N, _TARGET_BLOCK_ELEMS // (C * hwp)))
    Tn = _ceil_div(N, tile_n)
    n_pad = Tn * tile_n - N
    if n_pad:
        x3 = jnp.pad(x3, ((0, n_pad), (0, 0), (0, 0)))
        padded = True
    Np = Tn * tile_n

    g3 = gamma.astype(jnp.float32).reshape(1, C, 1)
    b3 = beta.astype(jnp.float32).reshape(1, C, 1)

    if Tn == 1:
        y3 = pl.pallas_call(
            functools.partial(_fused_nc_kernel, 1.0 / count),
            out_shape=jax.ShapeDtypeStruct((Np, C, hwp), x.dtype),
            in_specs=[pl.BlockSpec(memory_space=pltpu.MemorySpace.VMEM)] * 3,
            out_specs=pl.BlockSpec(memory_space=pltpu.MemorySpace.VMEM),
            compiler_params=pltpu.CompilerParams(
                vmem_limit_bytes=_VMEM_LIMIT_BYTES),
        )(x3, g3, b3)
    else:
        psum, psq = pl.pallas_call(
            _stats_nc_kernel,
            out_shape=(jax.ShapeDtypeStruct((Tn, C, hwp), jnp.float32),
                       jax.ShapeDtypeStruct((Tn, C, hwp), jnp.float32)),
            grid_spec=pl.GridSpec(
                grid=(Tn,),
                in_specs=[_streamed_spec((tile_n, C, hwp),
                                         lambda t: (t, 0, 0))],
                out_specs=(pl.BlockSpec((1, C, hwp), lambda t: (t, 0, 0)),
                           pl.BlockSpec((1, C, hwp), lambda t: (t, 0, 0))),
            ),
            compiler_params=_compiler_params(1),
        )(x3)

        mean = jnp.sum(psum, axis=(0, 2)) / count
        var = jnp.maximum(jnp.sum(psq, axis=(0, 2)) / count - mean * mean, 0.0)
        inv_std = lax.rsqrt(var + EPS)
        scale = gamma.astype(jnp.float32) * inv_std
        shift = beta.astype(jnp.float32) - mean * scale

        y3 = pl.pallas_call(
            _norm_nc_kernel,
            out_shape=jax.ShapeDtypeStruct((Np, C, hwp), x.dtype),
            grid_spec=pl.GridSpec(
                grid=(Tn,),
                in_specs=[
                    _streamed_spec((tile_n, C, hwp), lambda t: (t, 0, 0)),
                    pl.BlockSpec((1, C, 1), lambda t: (0, 0, 0)),
                    pl.BlockSpec((1, C, 1), lambda t: (0, 0, 0)),
                ],
                out_specs=pl.BlockSpec((tile_n, C, hwp), lambda t: (t, 0, 0)),
            ),
            compiler_params=_compiler_params(1),
            input_output_aliases={0: 0} if padded else {},
        )(x3, scale.reshape(1, C, 1), shift.reshape(1, C, 1))

    return y3[:N, :, :hw].reshape(N, C, H, W)


# --------------------------------- wrapper ----------------------------------


@jax.jit
def wrapped_batch_norm(x, gamma, beta):
    """x: (N, C, H, W); gamma, beta: (C,). Training-mode BatchNorm2d forward."""
    _, C, _, _ = x.shape
    if C == 1:
        return _bn_single_channel(x, gamma, beta)
    return _bn_multi_channel(x, gamma, beta)


def _reference(x, gamma, beta):
    mean = jnp.mean(x, axis=(0, 2, 3), keepdims=True)
    var = jnp.mean((x - mean) ** 2, axis=(0, 2, 3), keepdims=True)
    g = gamma.reshape(1, -1, 1, 1)
    b = beta.reshape(1, -1, 1, 1)
    return (x - mean) * lax.rsqrt(var + EPS) * g + b


if __name__ == "__main__":
    key = jax.random.PRNGKey(0)
    k1, k2 = jax.random.split(key)

    # BatchNorm2d(1) => single input channel; default parameters gamma=1, beta=0.
    N, C, H, W = 2, 1, 16, 16
    x = jax.random.normal(k1, (N, C, H, W), dtype=jnp.float32)
    gamma = jnp.ones((C,), dtype=jnp.float32)
    beta = jnp.zeros((C,), dtype=jnp.float32)

    y = jax.block_until_ready(wrapped_batch_norm(x, gamma, beta))
    assert y.shape == x.shape, "shape mismatch (small)"
    assert jnp.allclose(y, _reference(x, gamma, beta), atol=1e-4, rtol=1e-4), \
        "mismatch vs reference (small)"

    # Larger single-channel input: exercises the two-pass streamed path,
    # lane padding of a ragged tail, T>1 partial-sum blocking and in-place
    # aliasing of the normalize output.
    N2, H2, W2 = 9, 251, 1031
    x2 = jax.random.normal(k2, (N2, C, H2, W2), dtype=jnp.float32)
    y2 = jax.block_until_ready(wrapped_batch_norm(x2, gamma, beta))
    assert y2.shape == x2.shape, "shape mismatch (large)"
    assert jnp.allclose(y2, _reference(x2, gamma, beta), atol=1e-3, rtol=1e-3), \
        "mismatch vs reference (large)"

    print("KERNEL_OK")
</pallas_src>

<mosaic_0001>
module attributes {stable_mosaic.version = 11 : i64} {
  func.func @_fused_kernel(%arg0: memref<8x128xf32, #tpu.memory_space<vmem>>, %arg1: memref<1xf32, #tpu.memory_space<smem>>, %arg2: memref<1xf32, #tpu.memory_space<smem>>, %arg3: memref<8x128xf32, #tpu.memory_space<vmem>>) attributes {dimension_semantics = [], scalar_prefetch = 0 : i64, scratch_operands = 0 : i64, tpu.core_type = #tpu.core_type<tc>} {
    %c0 = arith.constant 0 : index
    %c0_0 = arith.constant 0 : index
    %0 = vector.load %arg0[%c0, %c0_0] : memref<8x128xf32, #tpu.memory_space<vmem>>, vector<8x128xf32>
    %1 = vector.shape_cast %0 : vector<8x128xf32> to vector<1x8x128xf32>
    %cst = arith.constant dense<0.000000e+00> : vector<1xf32>
    %2 = vector.multi_reduction <add>, %1, %cst [1, 2] : vector<1x8x128xf32> to vector<1xf32>
    %3 = vector.shape_cast %2 : vector<1xf32> to vector<1x1x1xf32>
    %4 = vector.extract %3[0, 0, 0] : f32 from vector<1x1x1xf32>
    %5 = vector.broadcast %4 : f32 to vector<1x1xf32>
    %6 = arith.mulf %0, %0 : vector<8x128xf32>
    %7 = vector.shape_cast %6 : vector<8x128xf32> to vector<1x8x128xf32>
    %cst_1 = arith.constant dense<0.000000e+00> : vector<1xf32>
    %8 = vector.multi_reduction <add>, %7, %cst_1 [1, 2] : vector<1x8x128xf32> to vector<1xf32>
    %9 = vector.shape_cast %8 : vector<1xf32> to vector<1x1x1xf32>
    %10 = vector.extract %9[0, 0, 0] : f32 from vector<1x1x1xf32>
    %11 = vector.broadcast %10 : f32 to vector<1x1xf32>
    %cst_2 = arith.constant 0.001953125 : f32
    %12 = vector.broadcast %cst_2 : f32 to vector<1x1xf32>
    %13 = arith.mulf %5, %12 : vector<1x1xf32>
    %cst_3 = arith.constant 0.001953125 : f32
    %14 = vector.broadcast %cst_3 : f32 to vector<1x1xf32>
    %15 = arith.mulf %11, %14 : vector<1x1xf32>
    %16 = arith.mulf %13, %13 : vector<1x1xf32>
    %17 = arith.subf %15, %16 : vector<1x1xf32>
    %cst_4 = arith.constant 0.000000e+00 : f32
    %18 = vector.broadcast %cst_4 : f32 to vector<1x1xf32>
    %19 = arith.maximumf %17, %18 : vector<1x1xf32>
    %cst_5 = arith.constant 9.99999974E-6 : f32
    %20 = vector.broadcast %cst_5 : f32 to vector<1x1xf32>
    %21 = arith.addf %19, %20 : vector<1x1xf32>
    %22 = math.rsqrt %21 : vector<1x1xf32>
    %c0_6 = arith.constant 0 : index
    %23 = memref.load %arg1[%c0_6] : memref<1xf32, #tpu.memory_space<smem>>
    %24 = vector.broadcast %23 : f32 to vector<1x1xf32>
    %25 = arith.mulf %24, %22 : vector<1x1xf32>
    %c0_7 = arith.constant 0 : index
    %26 = memref.load %arg2[%c0_7] : memref<1xf32, #tpu.memory_space<smem>>
    %27 = arith.mulf %13, %25 : vector<1x1xf32>
    %28 = vector.broadcast %26 : f32 to vector<1x1xf32>
    %29 = arith.subf %28, %27 : vector<1x1xf32>
    %30 = vector.broadcast %25 : vector<1x1xf32> to vector<8x128xf32>
    %31 = arith.mulf %0, %30 : vector<8x128xf32>
    %32 = vector.broadcast %29 : vector<1x1xf32> to vector<8x128xf32>
    %33 = arith.addf %31, %32 : vector<8x128xf32>
    %c0_8 = arith.constant 0 : index
    %c0_9 = arith.constant 0 : index
    %34 = vector.load %arg3[%c0_8, %c0_9] : memref<8x128xf32, #tpu.memory_space<vmem>>, vector<8x128xf32>
    tpu.vector_store %arg3[%c0_8, %c0_9], %33 {strides = array<i32>} : memref<8x128xf32, #tpu.memory_space<vmem>>, vector<8x128xf32>,
    return
  }
}

</mosaic_0001>

<llo_original>
// kernel: wrapped_batch_norm.1
$region0: #{wrapped_batch_norm.1}
  #allocation0 [shape = 'u32[]', space=smem, size = 0x4, offset = 0x4, fixed_abs, tag = 'smem constant byte address 0x4 - core index']
  #allocation1 [shape = 'u32[144,128]{1,0:T(1,128)}', space=vmem, size = 0x12000, scoped, tag = 'internal scratch']
  #allocation2 [shape = 'f32[1]{0:T(128)S(6)}', space=smem, size = 0x200, scoped, tag = 'scoped memory for wrapped_batch_norm.1']
  #allocation3 [shape = 'f32[1]{0:T(128)S(6)}', space=smem, size = 0x200, scoped, tag = 'scoped memory for wrapped_batch_norm.1']
  %s0 = inlined_call_operand.vmem [shape: f32[8,128], index: 0, kind: input, shape index: {}]
  %s1 = inlined_call_operand.<no memory space> [shape: f32[1], index: 1, kind: input, shape index: {}]
  %s2 = inlined_call_operand.<no memory space> [shape: f32[1], index: 2, kind: input, shape index: {}]
  %s3 = inlined_call_operand.vmem [shape: f32[8,128], index: 3, kind: output, shape index: {}]
  %s4 = sld [smem:[#allocation0]]
  $region22: #{wrapped_batch_norm.1} parent=0
    _
  %s6 = ssub.s32 1, %s4
  %s7 = scalar_select 0, %s6, %s4
  %8 = sst [smem:[#allocation2]] %s1
  %9 = sst [smem:[#allocation3]] %s2
  // Predicated region
  $region2: #{wrapped_batch_norm.1} parent=0 // pred_check
    _
  $region3: #{wrapped_batch_norm.1} parent=0 // pred_check_branch
    %11 = sbr.rel (0) target = $region5
  $region4: #{wrapped_batch_norm.1} parent=0 // pred_region
    _
  $region5: #{wrapped_batch_norm.1} parent=0 // pred_fallthru
    _
  // Predicated region
  $region6: #{wrapped_batch_norm.1} parent=0 // pred_check
    _
  $region7: #{wrapped_batch_norm.1} parent=0 // pred_check_branch
    %13 = sbr.rel (0) target = $region9
  $region8: #{wrapped_batch_norm.1} parent=0 // pred_region
    _
  $region9: #{wrapped_batch_norm.1} parent=0 // pred_fallthru
    _
  // Predicated region
  $region10: #{wrapped_batch_norm.1} parent=0 // pred_check
    _
  $region11: #{wrapped_batch_norm.1} parent=0 // pred_check_branch
    %15 = sbr.rel (0) target = $region13
  $region12: #{wrapped_batch_norm.1} parent=0 // pred_region
    _
  $region13: #{wrapped_batch_norm.1} parent=0 // pred_fallthru
    _
  %v16 = vld [vmem:[%s0] sm:$0xff]
  %17 = vadd.xlane.f32.xlu0 %v16
  %v18 = vpop.xlane.xlu0 %17
  %v19 = vrot.slane %v18, 4
  %v20 = vadd.f32 %v18, %v19
  %v21 = vrot.slane %v20, 2
  %v22 = vadd.f32 %v20, %v21
  %v23 = vrot.slane %v22, 1
  %v24 = vadd.f32 %v22, %v23
  %s25 = vtos %v24
  %v26 = vstv %s25
  %v27 = vmul.f32 %v16, %v16
  %28 = vadd.xlane.f32.xlu0 %v27
  %v29 = vpop.xlane.xlu0 %28
  %v30 = vrot.slane %v29, 4
  %v31 = vadd.f32 %v29, %v30
  %v32 = vrot.slane %v31, 2
  %v33 = vadd.f32 %v31, %v32
  %v34 = vrot.slane %v33, 1
  %v35 = vadd.f32 %v33, %v34
  %s36 = vtos %v35
  %v37 = vstv %s36
  %v38 = vmul.f32 %v26, 0.001953125
  %v39 = vmul.f32 %v37, 0.001953125
  %v40 = vmul.f32 %v38, %v38
  %v41 = vsub.f32 %v39, %v40
  %v42 = vmax.f32 %v41, 0.0
  %v43 = vadd.f32 %v42, 1e-05
  %v44 = vrsqrt.pop %v43
  %s45 = sld [smem:[#allocation2]]
  %v46 = vstv %s45
  %v47 = vmul.f32 %v46, %v44
  %s48 = sld [smem:[#allocation3]]
  %v49 = vmul.f32 %v38, %v47
  %v50 = vstv %s48
  %v51 = vsub.f32 %v50, %v49
  %v52 = vmul.f32 %v16, %v47
  %v53 = vadd.f32 %v52, %v51
  %54 = vst [vmem:[%s3] sm:$0xff] %v53
  // Predicated region
  $region14: #{wrapped_batch_norm.1} parent=0 // pred_check
    _
  $region15: #{wrapped_batch_norm.1} parent=0 // pred_check_branch
    %56 = sbr.rel (0) target = $region17
  $region16: #{wrapped_batch_norm.1} parent=0 // pred_region
    _
  $region17: #{wrapped_batch_norm.1} parent=0 // pred_fallthru
    _
  // Predicated region
  $region18: #{wrapped_batch_norm.1} parent=0 // pred_check
    _
  $region19: #{wrapped_batch_norm.1} parent=0 // pred_check_branch
    %58 = sbr.rel (0) target = $region21
  $region20: #{wrapped_batch_norm.1} parent=0 // pred_region
    _
  $region21: #{wrapped_batch_norm.1} parent=0 // pred_fallthru
    _

</llo_original>
